<compile_context>
chip_gen: v5e
topology: v5e:2x2
jax: 0.10.0
libtpu: 0.0.40
codegen_flags: <defaults>
</compile_context>

<pallas_src>
import jax
import jax.numpy as jnp
from jax.experimental import pallas as pl
from jax.experimental.pallas import tpu as pltpu

HIDDEN = 768     # fan-in of the pooling head
OUT = 3          # logical output width (nn.Linear(768, 3))
OUT_PAD = 128    # lane-dense padded output width
MAX_TB = 2048    # max batch rows per block (f32 x-block ~6 MiB, 2x buffered)


def _round_up(n, m):
    return ((n + m - 1) // m) * m


def pooling_kernel(x_ref, w_ref, b_ref, o_ref):
    # x_ref: (tb, 768), w_ref: (768, 128), b_ref: (1, 128), o_ref: (tb, 128)
    acc = jnp.dot(x_ref[...], w_ref[...], preferred_element_type=jnp.float32)
    o_ref[...] = (acc + b_ref[...].astype(jnp.float32)).astype(o_ref.dtype)


def pooling_head(x, w_pad, b_pad, out_dtype=None):
    """y = x @ W^T + b for nn.Linear(768, 3) applied to output[1].

    `w_pad` is the (768, 128) zero-padded, pre-transposed weight and `b_pad`
    the (1, 128) zero-padded bias (columns >= 3 are zero).  `x` may be f32 or
    bf16; accumulation is always f32 on the MXU.  Returns (B, 3) in
    `out_dtype` (defaults to x.dtype).
    """
    B = x.shape[0]
    out_dtype = x.dtype if out_dtype is None else out_dtype

    # Batch tile: multiple of the 8-row sublane quantum, capped at MAX_TB,
    # and sized so that B >= 16 yields at least 2 grid blocks (lets the
    # "parallel" axis shard across v7x's two TensorCores).  No jnp.pad: the
    # boundary block is clipped by Pallas; padded rows are never written back.
    b_align = _round_up(B, 8)
    tb = min(MAX_TB, max(8, _round_up(pl.cdiv(b_align, 2), 8)))
    n_blocks = pl.cdiv(B, tb)

    bytes_accessed = (
        B * HIDDEN * x.dtype.itemsize                      # x
        + HIDDEN * OUT_PAD * w_pad.dtype.itemsize          # weight (resident)
        + OUT_PAD * b_pad.dtype.itemsize                   # bias
        + B * OUT_PAD * jnp.dtype(out_dtype).itemsize      # output
    )

    y_pad = pl.pallas_call(
        pooling_kernel,
        out_shape=jax.ShapeDtypeStruct((B, OUT_PAD), out_dtype),
        grid=(n_blocks,),
        in_specs=[
            pl.BlockSpec((tb, HIDDEN), lambda i: (i, 0)),       # x: batch-tiled
            pl.BlockSpec((HIDDEN, OUT_PAD), lambda i: (0, 0)),  # W: replicated
            pl.BlockSpec((1, OUT_PAD), lambda i: (0, 0)),       # b: replicated
        ],
        out_specs=pl.BlockSpec((tb, OUT_PAD), lambda i: (i, 0)),
        compiler_params=pltpu.CompilerParams(
            dimension_semantics=("parallel",)),
        cost_estimate=pl.CostEstimate(
            flops=2 * B * HIDDEN * OUT_PAD,
            transcendentals=0,
            bytes_accessed=bytes_accessed),
    )(x, w_pad, b_pad)

    return y_pad[:, :OUT]


def init_params(key, dtype=jnp.float32):
    """torch.nn.Linear(768, 3) default init, emitted pre-transposed and
    zero-padded to the lane-dense (768, 128) / (1, 128) layout."""
    kw, kb = jax.random.split(key)
    bound = 1.0 / jnp.sqrt(jnp.float32(HIDDEN))
    w_t = jax.random.uniform(kw, (HIDDEN, OUT), jnp.float32, -bound, bound)
    b = jax.random.uniform(kb, (1, OUT), jnp.float32, -bound, bound)
    w_pad = jnp.zeros((HIDDEN, OUT_PAD), dtype).at[:, :OUT].set(
        w_t.astype(dtype))
    b_pad = jnp.zeros((1, OUT_PAD), dtype).at[:, :OUT].set(b.astype(dtype))
    return w_pad, b_pad


if __name__ == "__main__":
    key = jax.random.PRNGKey(0)
    k_x, k_p = jax.random.split(key)

    # Small batch, deliberately NOT a multiple of the tile so the boundary
    # block clipping path is exercised.  x stands in for output[1] of the
    # base model.
    B = 20
    x = jax.random.normal(k_x, (B, HIDDEN), jnp.float32)

    # f32 path (matches the original nn.Linear numerics exactly).
    w_pad, b_pad = init_params(k_p, jnp.float32)
    y = pooling_head(x, w_pad, b_pad)
    jax.block_until_ready(y)

    y_ref = x @ w_pad[:, :OUT] + b_pad[:, :OUT]
    assert y.shape == (B, OUT)
    assert jnp.allclose(y, y_ref, atol=1e-5, rtol=1e-5)

    # bf16-input path: halves x HBM traffic; MXU still accumulates in f32.
    w16, b16 = init_params(k_p, jnp.bfloat16)
    y16 = pooling_head(x.astype(jnp.bfloat16), w16, b16,
                       out_dtype=jnp.float32)
    jax.block_until_ready(y16)
    assert y16.shape == (B, OUT)
    assert jnp.allclose(y16, y_ref, atol=5e-2, rtol=5e-2)

    print("KERNEL_OK")
</pallas_src>

<mosaic_0001>
module attributes {stable_mosaic.version = 11 : i64} {
  func.func @pooling_kernel(%arg0: i32, %arg1: memref<16x768xf32, #tpu.memory_space<vmem>>, %arg2: memref<768x128xf32, #tpu.memory_space<vmem>>, %arg3: memref<1x128xf32, #tpu.memory_space<vmem>>, %arg4: memref<16x128xf32, #tpu.memory_space<vmem>>) attributes {dimension_semantics = [#tpu.dimension_semantics<parallel>], iteration_bounds = array<i64: 2>, scalar_prefetch = 0 : i64, scratch_operands = 0 : i64, tpu.core_type = #tpu.core_type<tc>, window_params = [{transform_indices = @transform_0, window_bounds = array<i64: 16, 768>}, {pipeline_mode = #tpu.pipeline_mode<synchronous>, transform_indices = @transform_1, window_bounds = array<i64: 768, 128>}, {pipeline_mode = #tpu.pipeline_mode<synchronous>, transform_indices = @transform_2, window_bounds = array<i64: 1, 128>}, {transform_indices = @transform_3, window_bounds = array<i64: 16, 128>}]} {
    %c0 = arith.constant 0 : index
    %c0_0 = arith.constant 0 : index
    %0 = vector.load %arg1[%c0, %c0_0] : memref<16x768xf32, #tpu.memory_space<vmem>>, vector<16x768xf32>
    %c0_1 = arith.constant 0 : index
    %c0_2 = arith.constant 0 : index
    %1 = vector.load %arg2[%c0_1, %c0_2] : memref<768x128xf32, #tpu.memory_space<vmem>>, vector<768x128xf32>
    %cst = arith.constant dense<0.000000e+00> : vector<16x128xf32>
    %2 = tpu.matmul %0, %1, %cst {dimension_numbers = #tpu.dot_dimension_numbers<[1], [0], [0], [1], [0, 0, 1, 1], [], []>} : vector<16x768xf32>, vector<768x128xf32>, vector<16x128xf32> -> vector<16x128xf32>
    %c0_3 = arith.constant 0 : index
    %c0_4 = arith.constant 0 : index
    %3 = vector.load %arg3[%c0_3, %c0_4] : memref<1x128xf32, #tpu.memory_space<vmem>>, vector<1x128xf32>
    %4 = vector.broadcast %3 : vector<1x128xf32> to vector<16x128xf32>
    %5 = arith.addf %2, %4 : vector<16x128xf32>
    %c0_5 = arith.constant 0 : index
    %c0_6 = arith.constant 0 : index
    %6 = vector.load %arg4[%c0_5, %c0_6] : memref<16x128xf32, #tpu.memory_space<vmem>>, vector<16x128xf32>
    tpu.vector_store %arg4[%c0_5, %c0_6], %5 {strides = array<i32>} : memref<16x128xf32, #tpu.memory_space<vmem>>, vector<16x128xf32>,
    return
  }
  func.func @transform_0(%arg0: i32) -> (i32, i32) {
    %c0_i32 = arith.constant 0 : i32
    %c0_i32_0 = arith.constant 0 : i32
    return %arg0, %c0_i32 : i32, i32
  }
  func.func @transform_1(%arg0: i32) -> (i32, i32) {
    %c0_i32 = arith.constant 0 : i32
    %c0_i32_0 = arith.constant 0 : i32
    %c0_i32_1 = arith.constant 0 : i32
    return %c0_i32, %c0_i32_0 : i32, i32
  }
  func.func @transform_2(%arg0: i32) -> (i32, i32) {
    %c0_i32 = arith.constant 0 : i32
    %c0_i32_0 = arith.constant 0 : i32
    %c0_i32_1 = arith.constant 0 : i32
    return %c0_i32, %c0_i32_0 : i32, i32
  }
  func.func @transform_3(%arg0: i32) -> (i32, i32) {
    %c0_i32 = arith.constant 0 : i32
    %c0_i32_0 = arith.constant 0 : i32
    return %arg0, %c0_i32 : i32, i32
  }
}

</mosaic_0001>

<llo_original>
// kernel: tpu_custom_call.1
$region0: #{tpu_custom_call.1}
  #allocation0 [shape = 'u32[]', space=smem, size = 0x4, offset = 0x4, fixed_abs, tag = 'smem constant byte address 0x4 - core index']
  #allocation1 [shape = 'u32[72,128]{1,0:T(1,128)}', space=vmem, size = 0x9000, scoped, tag = 'internal scratch']
  %s0 = inlined_call_operand.hbm [shape: f32[20,768], index: 0, kind: input, shape index: {}]
  %s1 = inlined_call_operand.hbm [shape: f32[768,128], index: 1, kind: input, shape index: {}]
  %s2 = inlined_call_operand.vmem [shape: f32[1,128], index: 2, kind: input, shape index: {}]
  %s3 = inlined_call_operand.hbm [shape: f32[20,128], index: 3, kind: output, shape index: {}]
  %s4 = sld [smem:[#allocation0]]
  $region53: #{tpu_custom_call.1} parent=0
    _
  %s6 = ssub.s32 1, %s4
  %s7 = scalar_select 0, %s6, %s4
  $region1: #{tpu_custom_call.1} parent=0
    #allocation2 [shape = 'u8[98304]{0}', space=vmem, size = 0x18000, scoped, tag = 'input window, operand 0']
    #allocation3 [shape = 's32[2]{0}', space=sflag, size = 0x8, scoped, tag = 'scoped memory for tpu_custom_call.1']
    #allocation4 [shape = 's32[2]{0}', space=sflag, size = 0x8, scoped, tag = 'scoped memory for tpu_custom_call.1']
    #allocation5 [shape = 'u8[393216]{0}', space=vmem, size = 0x60000, scoped, tag = 'input window, operand 1, single buffered']
    #allocation6 [shape = 's32[1]{0}', space=sflag, size = 0x4, scoped, tag = 'scoped memory for tpu_custom_call.1']
    #allocation7 [shape = 'u8[16384]{0}', space=vmem, size = 0x4000, scoped, tag = 'output window, operand 0']
    %8 = vsyncpa [#allocation3], 0
    %s9 = scalar_lea.sflag [#allocation3], 1
    %10 = vsyncpa %s9, 0
    %11 = vsyncpa [#allocation6], 0
    %12 = vsyncpa [#allocation4], 0
    %s13 = scalar_lea.sflag [#allocation4], 1
    %14 = vsyncpa %s13, 0
    loop: start=0, step=1, limit=4
    $region2: #{tpu_custom_call.1} parent=1 // loop_pre_header
      _
    $region3: #{tpu_custom_call.1} parent=1 // loop_header
      %s16 = sphi 0, %s20
      %p17 = scmp.ge.s32.totalorder %s16, 4
      %s26 = sphi 0, %s28
      %s29 = sphi 0, %s26
      %s30 = sphi 0, %s29
      %s46 = sphi 0, %s30
      %s50 = sphi 0, %s50
      %s52 = sphi 0, %s50
      %s53 = sphi 0, %s52
      %s67 = sphi 0, %s53
      %s71 = sphi 0, %s71
      %s73 = sphi 0, %s71
      %s74 = sphi 0, %s73
      %s88 = sphi 0, %s74
      %s94 = sphi 0, %s96
      %s97 = sphi 0, %s94
      %s98 = sphi 0, %s97
      %s114 = sphi 0, %s98
    $region4: #{tpu_custom_call.1} parent=1 // loop_header_branch
      %19 = sbr.rel (%p17) target = $region8
    $region5: #{tpu_custom_call.1} parent=1 // loop_body
      %s21 = ssub.s32 %s16, 1
      %s22 = ssub.s32 %s16, 2
      %s23 = sadd.s32 %s16, 1
      %s24 = ssub.s32 %s16, %s23
      %p25 = scmp.eq.s32.totalorder %s24, 0
      %s27 = sadd.s32 %s26, 1
      %s28 = scalar_select %p25, %s26, %s27
      %p31 = pneg %p25
      %p32 = scmp.eq.s32.totalorder %s16, 1
      %p33 = por %p31, %p32
      %p34 = scmp.ne.s32.totalorder %s26, %s29
      %p35 = scmp.eq.s32.totalorder %s16, 0
      %p36 = por %p34, %p35
      %p37 = scmp.ne.s32.totalorder %s26, %s29
      %p38 = scmp.eq.s32.totalorder %s21, 1
      %p39 = por %p37, %p38
      %p40 = scmp.ne.s32.totalorder %s29, %s30
      %p41 = scmp.eq.s32.totalorder %s21, 0
      %p42 = por %p40, %p41
      %p43 = scmp.ne.s32.totalorder %s29, %s30
      %p44 = scmp.eq.s32.totalorder %s22, 1
      %p45 = por %p43, %p44
      %p47 = scmp.ne.s32.totalorder %s30, %s46
      %p48 = scmp.eq.s32.totalorder %s22, 0
      %p49 = por %p47, %p48
      %s51 = sadd.s32 %s50, 1
      %p54 = scmp.eq.s32.totalorder %s16, 1
      %p55 = scmp.ne.s32.totalorder %s50, %s52
      %p56 = scmp.eq.s32.totalorder %s16, 0
      %p57 = por %p55, %p56
      %p58 = scmp.ne.s32.totalorder %s50, %s52
      %p59 = scmp.eq.s32.totalorder %s21, 1
      %p60 = por %p58, %p59
      %p61 = scmp.ne.s32.totalorder %s52, %s53
      %p62 = scmp.eq.s32.totalorder %s21, 0
      %p63 = por %p61, %p62
      %p64 = scmp.ne.s32.totalorder %s52, %s53
      %p65 = scmp.eq.s32.totalorder %s22, 1
      %p66 = por %p64, %p65
      %p68 = scmp.ne.s32.totalorder %s53, %s67
      %p69 = scmp.eq.s32.totalorder %s22, 0
      %p70 = por %p68, %p69
      %s72 = sadd.s32 %s71, 1
      %p75 = scmp.eq.s32.totalorder %s16, 1
      %p76 = scmp.ne.s32.totalorder %s71, %s73
      %p77 = scmp.eq.s32.totalorder %s16, 0
      %p78 = por %p76, %p77
      %p79 = scmp.ne.s32.totalorder %s71, %s73
      %p80 = scmp.eq.s32.totalorder %s21, 1
      %p81 = por %p79, %p80
      %p82 = scmp.ne.s32.totalorder %s73, %s74
      %p83 = scmp.eq.s32.totalorder %s21, 0
      %p84 = por %p82, %p83
      %p85 = scmp.ne.s32.totalorder %s73, %s74
      %p86 = scmp.eq.s32.totalorder %s22, 1
      %p87 = por %p85, %p86
      %p89 = scmp.ne.s32.totalorder %s74, %s88
      %p90 = scmp.eq.s32.totalorder %s22, 0
      %p91 = por %p89, %p90
      %s92 = ssub.s32 %s16, %s23
      %p93 = scmp.eq.s32.totalorder %s92, 0
      %s95 = sadd.s32 %s94, 1
      %s96 = scalar_select %p93, %s94, %s95
      %p99 = pneg %p93
      %p100 = scmp.eq.s32.totalorder %s16, 1
      %p101 = por %p99, %p100
      %p102 = scmp.ne.s32.totalorder %s94, %s97
      %p103 = scmp.eq.s32.totalorder %s16, 0
      %p104 = por %p102, %p103
      %p105 = scmp.ne.s32.totalorder %s94, %s97
      %p106 = scmp.eq.s32.totalorder %s21, 1
      %p107 = por %p105, %p106
      %p108 = scmp.ne.s32.totalorder %s97, %s98
      %p109 = scmp.eq.s32.totalorder %s21, 0
      %p110 = por %p108, %p109
      %p111 = scmp.ne.s32.totalorder %s97, %s98
      %p112 = scmp.eq.s32.totalorder %s22, 1
      %p113 = por %p111, %p112
      %p115 = scmp.ne.s32.totalorder %s98, %s114
      %p116 = scmp.eq.s32.totalorder %s22, 0
      %p117 = por %p115, %p116
      %p118 = scmp.le.s32.totalorder 1, %s16
      %p119 = scmp.lt.s32.totalorder %s16, 3
      %p120 = pnand %p118, %p119
      %p121 = pneg %p120
      // Predicated region
      $region9: #{tpu_custom_call.1} parent=5 // pred_check
        _
      $region10: #{tpu_custom_call.1} parent=5 // pred_check_branch
        %123 = sbr.rel (%p120) target = $region12
      $region11: #{tpu_custom_call.1} parent=5 // pred_region
        %s124 = ssub.s32 %s16, 1
        // Predicated region
        $region13: #{tpu_custom_call.1} parent=11 // pred_check
          %p125 = pneg %p63
        $region14: #{tpu_custom_call.1} parent=11 // pred_check_branch
          %127 = sbr.rel (%p125) target = $region16
        $region15: #{tpu_custom_call.1} parent=11 // pred_region
          %129 = vsyncadd [#allocation6], 0
          %s130 = sshll.u32 %s1, 4
          %s131 = int_to_ptr.hbm [resolvable:$true] %s130
          %s132 = sshll.u32 [#allocation5], 4
          %s133 = int_to_ptr.vmem [resolvable:$true] %s132
          %138 = dma.hbm_to_vmem [thread:$0]  %s131, 12288, %s133, [#allocation6], 128, 128, 8
        $region16: #{tpu_custom_call.1} parent=11 // pred_fallthru
          _
        // Predicated region
        $region17: #{tpu_custom_call.1} parent=11 // pred_check
          %p139 = pneg %p84
        $region18: #{tpu_custom_call.1} parent=11 // pred_check_branch
          %141 = sbr.rel (%p139) target = $region20
        $region19: #{tpu_custom_call.1} parent=11 // pred_region
          _
        $region20: #{tpu_custom_call.1} parent=11 // pred_fallthru
          _
      $region12: #{tpu_custom_call.1} parent=5 // pred_fallthru
        _
      %p142 = scmp.lt.s32.totalorder %s16, 2
      // Predicated region
      $region21: #{tpu_custom_call.1} parent=5 // pred_check
        %p143 = pneg %p142
      $region22: #{tpu_custom_call.1} parent=5 // pred_check_branch
        %145 = sbr.rel (%p143) target = $region24
      $region23: #{tpu_custom_call.1} parent=5 // pred_region
        // Predicated region
        $region25: #{tpu_custom_call.1} parent=23 // pred_check
          %p146 = pneg %p36
        $region26: #{tpu_custom_call.1} parent=23 // pred_check_branch
          %148 = sbr.rel (%p146) target = $region28
        $region27: #{tpu_custom_call.1} parent=23 // pred_region
          %s149 = sand.u32 %s26, 1
          %s150 = scalar_lea.sflag [#allocation3], %s149
          %s151 = sand.u32 %s26, 1
          %s152 = smul.addr %s151, 96
          %s153 = scalar_lea.vmem [#allocation2], %s152
          %s154 = smul.u32 2, %s16
          %s155 = ssub.s32 3, %s154
          %p156 = scmp.lt.s32.totalorder %s155, 2
          %s157 = scalar_select %p156, %s155, 2
          %s158 = smul.u32 8, %s157
          %s159 = smul.u32 %s158, 6
          %s160 = ssub.s32 96, %s159
          %s161 = sshll.u32 %s160, 4
          %162 = vsyncadd %s150, %s161
          %p163 = scmp.ne.s32.totalorder 0, %s159
          %s164 = smul.addr %s154, 6
          %s165 = smul.addr %s164, 8
          %s166 = scalar_lea.hbm %s0, %s165
          %s167 = smul.u32 48, %s157
          %s168 = sshll.u32 %s166, 4
          %s169 = int_to_ptr.hbm [resolvable:$true] %s168
          %s170 = sshll.u32 %s153, 4
          %s171 = int_to_ptr.vmem [resolvable:$true] %s170
          %s172 = sshll.u32 %s167, 4
          %176 = dma.hbm_to_vmem [thread:$0]  (%p163), %s169, %s172, %s171, %s150, 768, 768, 48
        $region28: #{tpu_custom_call.1} parent=23 // pred_fallthru
          _
      $region24: #{tpu_custom_call.1} parent=5 // pred_fallthru
        _
      %p177 = scmp.le.s32.totalorder 1, %s16
      %p178 = scmp.lt.s32.totalorder %s16, 3
      %p179 = pnand %p177, %p178
      %p180 = pneg %p179
      // Predicated region
      $region29: #{tpu_custom_call.1} parent=5 // pred_check
        _
      $region30: #{tpu_custom_call.1} parent=5 // pred_check_branch
        %182 = sbr.rel (%p179) target = $region32
      $region31: #{tpu_custom_call.1} parent=5 // pred_region
        %s183 = ssub.s32 %s16, 1
        %s184 = sand.u32 %s29, 1
        %s185 = scalar_lea.sflag [#allocation3], %s184
        %s186 = sand.u32 %s29, 1
        %s187 = smul.addr %s186, 96
        %s188 = scalar_lea.vmem [#allocation2], %s187
        // Predicated region
        $region33: #{tpu_custom_call.1} parent=31 // pred_check
          %p189 = pneg %p42
        $region34: #{tpu_custom_call.1} parent=31 // pred_check_branch
          %191 = sbr.rel (%p189) target = $region36
        $region35: #{tpu_custom_call.1} parent=31 // pred_region
          %193 = dma.done %s185, 1536
        $region36: #{tpu_custom_call.1} parent=31 // pred_fallthru
          _
        // Predicated region
        $region37: #{tpu_custom_call.1} parent=31 // pred_check
          %p194 = pneg %p63
        $region38: #{tpu_custom_call.1} parent=31 // pred_check_branch
          %196 = sbr.rel (%p194) target = $region40
        $region39: #{tpu_custom_call.1} parent=31 // pred_region
          %198 = dma.done [#allocation6], 12288
        $region40: #{tpu_custom_call.1} parent=31 // pred_fallthru
          _
        %s199 = sand.u32 %s29, 1
        %s200 = scalar_lea.sflag [#allocation3], %s199
        %s201 = sand.u32 %s29, 1
        %s202 = smul.addr %s201, 96
        %s203 = scalar_lea.vmem [#allocation2], %s202
        %p204 = pneg %p42
        %p205 = pneg %p39
        %p206 = pneg %p63
        %p207 = pneg %p60
        %p208 = pneg %p84
        %p209 = pneg %p81
        %p210 = pneg %p110
        %p211 = pneg %p107
        %s212 = sand.u32 %s97, 1
        %s213 = scalar_lea.sflag [#allocation4], %s212
        %s214 = sand.u32 %s97, 1
        %s215 = smul.addr %s214, 16
        %s216 = scalar_lea.vmem [#allocation7], %s215
        %s217 = smul.u32 2, %s21
        %s218 = ssub.s32 3, %s217
        %p219 = scmp.lt.s32.totalorder %s218, 2
        %s220 = scalar_select %p219, %s218, 2
        %s221 = smul.u32 8, %s220
        %s222 = smul.u32 %s221, 6
        %s223 = smul.u32 2, %s21
        %s224 = ssub.s32 3, %s223
        %p225 = scmp.lt.s32.totalorder %s224, 2
        %s226 = scalar_select %p225, %s224, 2
        %s227 = smul.u32 8, %s226
        %v228 = vld [vmem:[%s188] sm:$0xff]
        %v229 = vld [vmem:[%s188 + $0x8] sm:$0xff]
        %v230 = vld [vmem:[%s188 + $0x10] sm:$0xff]
        %v231 = vld [vmem:[%s188 + $0x18] sm:$0xff]
        %v232 = vld [vmem:[%s188 + $0x20] sm:$0xff]
        %v233 = vld [vmem:[%s188 + $0x28] sm:$0xff]
        %v234 = vld [vmem:[%s188 + $0x30] sm:$0xff]
        %v235 = vld [vmem:[%s188 + $0x38] sm:$0xff]
        %v236 = vld [vmem:[%s188 + $0x40] sm:$0xff]
        %v237 = vld [vmem:[%s188 + $0x48] sm:$0xff]
        %v238 = vld [vmem:[%s188 + $0x50] sm:$0xff]
        %v239 = vld [vmem:[%s188 + $0x58] sm:$0xff]
        %v240 = vld [vmem:[#allocation5] sm:$0xff]
        %v241 = vld [vmem:[#allocation5 + $0x8] sm:$0xff]
        %v242 = vld [vmem:[#allocation5 + $0x10] sm:$0xff]
        %v243 = vld [vmem:[#allocation5 + $0x18] sm:$0xff]
        %v244 = vld [vmem:[#allocation5 + $0x20] sm:$0xff]
        %v245 = vld [vmem:[#allocation5 + $0x28] sm:$0xff]
        %v246 = vld [vmem:[#allocation5 + $0x30] sm:$0xff]
        %v247 = vld [vmem:[#allocation5 + $0x38] sm:$0xff]
        %v248 = vld [vmem:[#allocation5 + $0x40] sm:$0xff]
        %v249 = vld [vmem:[#allocation5 + $0x48] sm:$0xff]
        %v250 = vld [vmem:[#allocation5 + $0x50] sm:$0xff]
        %v251 = vld [vmem:[#allocation5 + $0x58] sm:$0xff]
        %v252 = vld [vmem:[#allocation5 + $0x60] sm:$0xff]
        %v253 = vld [vmem:[#allocation5 + $0x68] sm:$0xff]
        %v254 = vld [vmem:[#allocation5 + $0x70] sm:$0xff]
        %v255 = vld [vmem:[#allocation5 + $0x78] sm:$0xff]
        %v256 = vld [vmem:[#allocation5 + $0x80] sm:$0xff]
        %v257 = vld [vmem:[#allocation5 + $0x88] sm:$0xff]
        %v258 = vld [vmem:[#allocation5 + $0x90] sm:$0xff]
        %v259 = vld [vmem:[#allocation5 + $0x98] sm:$0xff]
        %v260 = vld [vmem:[#allocation5 + $0xa0] sm:$0xff]
        %v261 = vld [vmem:[#allocation5 + $0xa8] sm:$0xff]
        %v262 = vld [vmem:[#allocation5 + $0xb0] sm:$0xff]
        %v263 = vld [vmem:[#allocation5 + $0xb8] sm:$0xff]
        %v264 = vld [vmem:[#allocation5 + $0xc0] sm:$0xff]
        %v265 = vld [vmem:[#allocation5 + $0xc8] sm:$0xff]
        %v266 = vld [vmem:[#allocation5 + $0xd0] sm:$0xff]
        %v267 = vld [vmem:[#allocation5 + $0xd8] sm:$0xff]
        %v268 = vld [vmem:[#allocation5 + $0xe0] sm:$0xff]
        %v269 = vld [vmem:[#allocation5 + $0xe8] sm:$0xff]
        %v270 = vld [vmem:[#allocation5 + $0xf0] sm:$0xff]
        %v271 = vld [vmem:[#allocation5 + $0xf8] sm:$0xff]
        %v272 = vld [vmem:[#allocation5 + $0x100] sm:$0xff]
        %v273 = vld [vmem:[#allocation5 + $0x108] sm:$0xff]
        %v274 = vld [vmem:[#allocation5 + $0x110] sm:$0xff]
        %v275 = vld [vmem:[#allocation5 + $0x118] sm:$0xff]
        %v276 = vld [vmem:[#allocation5 + $0x120] sm:$0xff]
        %v277 = vld [vmem:[#allocation5 + $0x128] sm:$0xff]
        %v278 = vld [vmem:[#allocation5 + $0x130] sm:$0xff]
        %v279 = vld [vmem:[#allocation5 + $0x138] sm:$0xff]
        %v280 = vld [vmem:[#allocation5 + $0x140] sm:$0xff]
        %v281 = vld [vmem:[#allocation5 + $0x148] sm:$0xff]
        %v282 = vld [vmem:[#allocation5 + $0x150] sm:$0xff]
        %v283 = vld [vmem:[#allocation5 + $0x158] sm:$0xff]
        %v284 = vld [vmem:[#allocation5 + $0x160] sm:$0xff]
        %v285 = vld [vmem:[#allocation5 + $0x168] sm:$0xff]
        %v286 = vld [vmem:[#allocation5 + $0x170] sm:$0xff]
        %v287 = vld [vmem:[#allocation5 + $0x178] sm:$0xff]
        %v288 = vld [vmem:[#allocation5 + $0x180] sm:$0xff]
        %v289 = vld [vmem:[#allocation5 + $0x188] sm:$0xff]
        %v290 = vld [vmem:[#allocation5 + $0x190] sm:$0xff]
        %v291 = vld [vmem:[#allocation5 + $0x198] sm:$0xff]
        %v292 = vld [vmem:[#allocation5 + $0x1a0] sm:$0xff]
        %v293 = vld [vmem:[#allocation5 + $0x1a8] sm:$0xff]
        %v294 = vld [vmem:[#allocation5 + $0x1b0] sm:$0xff]
        %v295 = vld [vmem:[#allocation5 + $0x1b8] sm:$0xff]
        %v296 = vld [vmem:[#allocation5 + $0x1c0] sm:$0xff]
        %v297 = vld [vmem:[#allocation5 + $0x1c8] sm:$0xff]
        %v298 = vld [vmem:[#allocation5 + $0x1d0] sm:$0xff]
        %v299 = vld [vmem:[#allocation5 + $0x1d8] sm:$0xff]
        %v300 = vld [vmem:[#allocation5 + $0x1e0] sm:$0xff]
        %v301 = vld [vmem:[#allocation5 + $0x1e8] sm:$0xff]
        %v302 = vld [vmem:[#allocation5 + $0x1f0] sm:$0xff]
        %v303 = vld [vmem:[#allocation5 + $0x1f8] sm:$0xff]
        %v304 = vld [vmem:[#allocation5 + $0x200] sm:$0xff]
        %v305 = vld [vmem:[#allocation5 + $0x208] sm:$0xff]
        %v306 = vld [vmem:[#allocation5 + $0x210] sm:$0xff]
        %v307 = vld [vmem:[#allocation5 + $0x218] sm:$0xff]
        %v308 = vld [vmem:[#allocation5 + $0x220] sm:$0xff]
        %v309 = vld [vmem:[#allocation5 + $0x228] sm:$0xff]
        %v310 = vld [vmem:[#allocation5 + $0x230] sm:$0xff]
        %v311 = vld [vmem:[#allocation5 + $0x238] sm:$0xff]
        %v312 = vld [vmem:[#allocation5 + $0x240] sm:$0xff]
        %v313 = vld [vmem:[#allocation5 + $0x248] sm:$0xff]
        %v314 = vld [vmem:[#allocation5 + $0x250] sm:$0xff]
        %v315 = vld [vmem:[#allocation5 + $0x258] sm:$0xff]
        %v316 = vld [vmem:[#allocation5 + $0x260] sm:$0xff]
        %v317 = vld [vmem:[#allocation5 + $0x268] sm:$0xff]
        %v318 = vld [vmem:[#allocation5 + $0x270] sm:$0xff]
        %v319 = vld [vmem:[#allocation5 + $0x278] sm:$0xff]
        %v320 = vld [vmem:[#allocation5 + $0x280] sm:$0xff]
        %v321 = vld [vmem:[#allocation5 + $0x288] sm:$0xff]
        %v322 = vld [vmem:[#allocation5 + $0x290] sm:$0xff]
        %v323 = vld [vmem:[#allocation5 + $0x298] sm:$0xff]
        %v324 = vld [vmem:[#allocation5 + $0x2a0] sm:$0xff]
        %v325 = vld [vmem:[#allocation5 + $0x2a8] sm:$0xff]
        %v326 = vld [vmem:[#allocation5 + $0x2b0] sm:$0xff]
        %v327 = vld [vmem:[#allocation5 + $0x2b8] sm:$0xff]
        %v328 = vld [vmem:[#allocation5 + $0x2c0] sm:$0xff]
        %v329 = vld [vmem:[#allocation5 + $0x2c8] sm:$0xff]
        %v330 = vld [vmem:[#allocation5 + $0x2d0] sm:$0xff]
        %v331 = vld [vmem:[#allocation5 + $0x2d8] sm:$0xff]
        %v332 = vld [vmem:[#allocation5 + $0x2e0] sm:$0xff]
        %v333 = vld [vmem:[#allocation5 + $0x2e8] sm:$0xff]
        %v334 = vld [vmem:[#allocation5 + $0x2f0] sm:$0xff]
        %v335 = vld [vmem:[#allocation5 + $0x2f8] sm:$0xff]
        %v336 = vld [vmem:[%s2] sm:$0x1]
        %v338 = vperm.slane %v336, 0
        %340 = vmatpush.msra.mxu0 %v255
        %341 = vmatpush.msra.mxu0 %v254
        %342 = vmatpush.msra.mxu0 %v253
        %343 = vmatpush.msra.mxu0 %v252
        %344 = vmatpush.msra.mxu0 %v251
        %345 = vmatpush.msra.mxu0 %v250
        %346 = vmatpush.msra.mxu0 %v249
        %347 = vmatpush.msra.mxu0 %v248
        %348 = vmatpush.msra.mxu0 %v247
        %349 = vmatpush.msra.mxu0 %v246
        %350 = vmatpush.msra.mxu0 %v245
        %351 = vmatpush.msra.mxu0 %v244
        %352 = vmatpush.msra.mxu0 %v243
        %353 = vmatpush.msra.mxu0 %v242
        %354 = vmatpush.msra.mxu0 %v241
        %355 = vmatpush.msra.mxu0 %v240
        %356 = vmatmul.f32.gmra.mxu0 %v228
        %v357 = vpop.f32.mrf.mxu0
        %v358 = vadd.f32 %v338, %v357
        %359 = vmatmul.f32.gmra.mxu0 %v234
        %v360 = vpop.f32.mrf.mxu0
        %v361 = vadd.f32 %v338, %v360
        %362 = vdwg.mxu0
        %363 = vmatpush.msra.mxu0 %v271
        %364 = vmatpush.msra.mxu0 %v270
        %365 = vmatpush.msra.mxu0 %v269
        %366 = vmatpush.msra.mxu0 %v268
        %367 = vmatpush.msra.mxu0 %v267
        %368 = vmatpush.msra.mxu0 %v266
        %369 = vmatpush.msra.mxu0 %v265
        %370 = vmatpush.msra.mxu0 %v264
        %371 = vmatpush.msra.mxu0 %v263
        %372 = vmatpush.msra.mxu0 %v262
        %373 = vmatpush.msra.mxu0 %v261
        %374 = vmatpush.msra.mxu0 %v260
        %375 = vmatpush.msra.mxu0 %v259
        %376 = vmatpush.msra.mxu0 %v258
        %377 = vmatpush.msra.mxu0 %v257
        %378 = vmatpush.msra.mxu0 %v256
        %379 = vmatmul.f32.gmra.mxu0 %v229
        %v380 = vpop.f32.mrf.mxu0
        %v381 = vadd.f32 %v358, %v380
        %382 = vmatmul.f32.gmra.mxu0 %v235
        %v383 = vpop.f32.mrf.mxu0
        %v384 = vadd.f32 %v361, %v383
        %385 = vdwg.mxu0
        %386 = vmatpush.msra.mxu0 %v287
        %387 = vmatpush.msra.mxu0 %v286
        %388 = vmatpush.msra.mxu0 %v285
        %389 = vmatpush.msra.mxu0 %v284
        %390 = vmatpush.msra.mxu0 %v283
        %391 = vmatpush.msra.mxu0 %v282
        %392 = vmatpush.msra.mxu0 %v281
        %393 = vmatpush.msra.mxu0 %v280
        %394 = vmatpush.msra.mxu0 %v279
        %395 = vmatpush.msra.mxu0 %v278
        %396 = vmatpush.msra.mxu0 %v277
        %397 = vmatpush.msra.mxu0 %v276
        %398 = vmatpush.msra.mxu0 %v275
        %399 = vmatpush.msra.mxu0 %v274
        %400 = vmatpush.msra.mxu0 %v273
        %401 = vmatpush.msra.mxu0 %v272
        %402 = vmatmul.f32.gmra.mxu0 %v230
        %v403 = vpop.f32.mrf.mxu0
        %v404 = vadd.f32 %v381, %v403
        %405 = vmatmul.f32.gmra.mxu0 %v236
        %v406 = vpop.f32.mrf.mxu0
        %v407 = vadd.f32 %v384, %v406
        %408 = vdwg.mxu0
        %409 = vmatpush.msra.mxu0 %v303
        %410 = vmatpush.msra.mxu0 %v302
        %411 = vmatpush.msra.mxu0 %v301
        %412 = vmatpush.msra.mxu0 %v300
        %413 = vmatpush.msra.mxu0 %v299
        %414 = vmatpush.msra.mxu0 %v298
        %415 = vmatpush.msra.mxu0 %v297
        %416 = vmatpush.msra.mxu0 %v296
        %417 = vmatpush.msra.mxu0 %v295
        %418 = vmatpush.msra.mxu0 %v294
        %419 = vmatpush.msra.mxu0 %v293
        %420 = vmatpush.msra.mxu0 %v292
        %421 = vmatpush.msra.mxu0 %v291
        %422 = vmatpush.msra.mxu0 %v290
        %423 = vmatpush.msra.mxu0 %v289
        %424 = vmatpush.msra.mxu0 %v288
        %425 = vmatmul.f32.gmra.mxu0 %v231
        %v426 = vpop.f32.mrf.mxu0
        %v427 = vadd.f32 %v404, %v426
        %428 = vmatmul.f32.gmra.mxu0 %v237
        %v429 = vpop.f32.mrf.mxu0
        %v430 = vadd.f32 %v407, %v429
        %431 = vdwg.mxu0
        %432 = vmatpush.msra.mxu0 %v319
        %433 = vmatpush.msra.mxu0 %v318
        %434 = vmatpush.msra.mxu0 %v317
        %435 = vmatpush.msra.mxu0 %v316
        %436 = vmatpush.msra.mxu0 %v315
        %437 = vmatpush.msra.mxu0 %v314
        %438 = vmatpush.msra.mxu0 %v313
        %439 = vmatpush.msra.mxu0 %v312
        %440 = vmatpush.msra.mxu0 %v311
        %441 = vmatpush.msra.mxu0 %v310
        %442 = vmatpush.msra.mxu0 %v309
        %443 = vmatpush.msra.mxu0 %v308
        %444 = vmatpush.msra.mxu0 %v307
        %445 = vmatpush.msra.mxu0 %v306
        %446 = vmatpush.msra.mxu0 %v305
        %447 = vmatpush.msra.mxu0 %v304
        %448 = vmatmul.f32.gmra.mxu0 %v232
        %v449 = vpop.f32.mrf.mxu0
        %v450 = vadd.f32 %v427, %v449
        %451 = vmatmul.f32.gmra.mxu0 %v238
        %v452 = vpop.f32.mrf.mxu0
        %v453 = vadd.f32 %v430, %v452
        %454 = vdwg.mxu0
        %455 = vmatpush.msra.mxu0 %v335
        %456 = vmatpush.msra.mxu0 %v334
        %457 = vmatpush.msra.mxu0 %v333
        %458 = vmatpush.msra.mxu0 %v332
        %459 = vmatpush.msra.mxu0 %v331
        %460 = vmatpush.msra.mxu0 %v330
        %461 = vmatpush.msra.mxu0 %v329
        %462 = vmatpush.msra.mxu0 %v328
        %463 = vmatpush.msra.mxu0 %v327
        %464 = vmatpush.msra.mxu0 %v326
        %465 = vmatpush.msra.mxu0 %v325
        %466 = vmatpush.msra.mxu0 %v324
        %467 = vmatpush.msra.mxu0 %v323
        %468 = vmatpush.msra.mxu0 %v322
        %469 = vmatpush.msra.mxu0 %v321
        %470 = vmatpush.msra.mxu0 %v320
        %471 = vmatmul.f32.gmra.mxu0 %v233
        %v472 = vpop.f32.mrf.mxu0
        %v473 = vadd.f32 %v450, %v472
        %474 = vmatmul.f32.gmra.mxu0 %v239
        %v475 = vpop.f32.mrf.mxu0
        %v476 = vadd.f32 %v453, %v475
        %477 = vdwg.mxu0
        %478 = vst [vmem:[%s216] sm:$0xff] %v473
        %479 = vst [vmem:[%s216 + $0x8] sm:$0xff] %v476
        %s480 = sand.u32 %s97, 1
        %s481 = scalar_lea.sflag [#allocation4], %s480
        %s482 = sand.u32 %s97, 1
        %s483 = smul.addr %s482, 16
        %s484 = scalar_lea.vmem [#allocation7], %s483
        // Predicated region
        $region41: #{tpu_custom_call.1} parent=31 // pred_check
          %p485 = pneg %p107
        $region42: #{tpu_custom_call.1} parent=31 // pred_check_branch
          %487 = sbr.rel (%p485) target = $region44
        $region43: #{tpu_custom_call.1} parent=31 // pred_region
          %s488 = smul.u32 2, %s21
          %s489 = ssub.s32 3, %s488
          %p490 = scmp.lt.s32.totalorder %s489, 2
          %s491 = scalar_select %p490, %s489, 2
          %s492 = smul.u32 8, %s491
          %s493 = ssub.s32 16, %s492
          %s494 = sshll.u32 %s493, 4
          %495 = vsyncadd %s481, %s494
          %p496 = scmp.ne.s32.totalorder 0, %s492
          %s497 = smul.addr %s488, 8
          %s498 = scalar_lea.hbm %s3, %s497
          %s499 = smul.u32 8, %s491
          %s500 = sshll.u32 %s484, 4
          %s501 = int_to_ptr.vmem [resolvable:$true] %s500
          %s502 = sshll.u32 %s498, 4
          %s503 = int_to_ptr.hbm [resolvable:$true] %s502
          %s504 = sshll.u32 %s499, 4
          %508 = dma.vmem_to_hbm [thread:$0]  (%p496), %s501, %s504, %s503, %s481, 128, 128, 8
        $region44: #{tpu_custom_call.1} parent=31 // pred_fallthru
          _
      $region32: #{tpu_custom_call.1} parent=5 // pred_fallthru
        _
      %p509 = scmp.le.s32.totalorder 2, %s16
      // Predicated region
      $region45: #{tpu_custom_call.1} parent=5 // pred_check
        %p510 = pneg %p509
      $region46: #{tpu_custom_call.1} parent=5 // pred_check_branch
        %512 = sbr.rel (%p510) target = $region48
      $region47: #{tpu_custom_call.1} parent=5 // pred_region
        %s513 = ssub.s32 %s16, 2
        // Predicated region
        $region49: #{tpu_custom_call.1} parent=47 // pred_check
          %p514 = pneg %p113
        $region50: #{tpu_custom_call.1} parent=47 // pred_check_branch
          %516 = sbr.rel (%p514) target = $region52
        $region51: #{tpu_custom_call.1} parent=47 // pred_region
          %s517 = sand.u32 %s98, 1
          %s518 = scalar_lea.sflag [#allocation4], %s517
          %s519 = sand.u32 %s98, 1
          %s520 = smul.addr %s519, 16
          %s521 = scalar_lea.vmem [#allocation7], %s520
          %523 = dma.done %s518, 256
        $region52: #{tpu_custom_call.1} parent=47 // pred_fallthru
          _
      $region48: #{tpu_custom_call.1} parent=5 // pred_fallthru
        _
    $region6: #{tpu_custom_call.1} parent=1 // loop_footer
      %s20 = sadd.s32 1, %s16
    $region7: #{tpu_custom_call.1} parent=1 // loop_footer_branch
      %15 = sbr.rel target = $region3
    $region8: #{tpu_custom_call.1} parent=1 // loop_exit
      _
    %524 = vsyncpa [#allocation3], 1
    %s525 = scalar_lea.sflag [#allocation3], 1
    %526 = vsyncpa %s525, 1
    %527 = vsyncpa [#allocation6], 1
    %528 = vsyncpa [#allocation4], 1
    %s529 = scalar_lea.sflag [#allocation4], 1
    %530 = vsyncpa %s529, 1

</llo_original>
